<compile_context>
chip_gen: v7x
topology: tpu7x:2x2x1
jax: 0.10.0
libtpu: 0.0.40
codegen_flags: <defaults>
</compile_context>

<pallas_src>
import functools

import jax
import jax.numpy as jnp
from jax.experimental import pallas as pl
from jax.experimental.pallas import tpu as pltpu


def _cdiv(a, b):
    return -(-a // b)


def _sh_kernel(x_ref, o_ref, *, degree, inv_size):
    # x_ref: (3, TS, 128)   o_ref: (degree**2, TS, 128)
    # Each row below is a full (TS, 128) tile -> full-vreg VPU ops, unmasked lane-dense stores.
    # NOTE: multiply by 1/size (not divide) -- differs from torch only in the last ulp.
    x = x_ref[0] * inv_size
    y = x_ref[1] * inv_size
    z = x_ref[2] * inv_size

    # l = 0
    o_ref[0] = jnp.full_like(x, 0.28209479177387814)
    if degree > 1:
        # l = 1
        o_ref[1] = -0.48860251190291987 * y
        o_ref[2] = 0.48860251190291987 * z
        o_ref[3] = -0.48860251190291987 * x
    if degree > 2:
        # l = 2  -- emit rows as soon as their temporaries exist (short live ranges)
        xy = x * y
        o_ref[4] = 1.0925484305920792 * xy
        yz = y * z
        o_ref[5] = -1.0925484305920792 * yz
        xz = x * z
        o_ref[7] = -1.0925484305920792 * xz
        z2 = z * z
        o_ref[6] = 0.94617469575755997 * z2 - 0.31539156525251999
        x2 = x * x
        y2 = y * y
        x2my2 = x2 - y2                       # shared by rows 8 and 14
        o_ref[8] = 0.54627421529603959 * x2my2
    if degree > 3:
        # l = 3
        o_ref[10] = 2.8906114426405538 * xy * z
        o_ref[9] = 0.59004358992664352 * y * (y2 - 3.0 * x2)
        o_ref[15] = 0.59004358992664352 * x * (3.0 * y2 - x2)
        t = 0.45704579946446572 * (1.0 - 5.0 * z2)   # shared by rows 11 and 13
        o_ref[11] = y * t
        o_ref[13] = x * t
        o_ref[12] = 0.3731763325901154 * z * (5.0 * z2 - 3.0)
        o_ref[14] = 1.4453057213202769 * z * x2my2
    # TODO(synk): degrees 5..8 (present in the CUDA kernel) are not ported here.


def _pick_tb_sub(n_sub, block_sub):
    """Sublane-block size: multiple of 8, <= block_sub, keeps the grid at ~>=4 steps
    whenever the problem is big enough (feeds both v7x TensorCores after megacore
    sharding of the 'parallel' axis)."""
    max_tb = max(8, (int(block_sub) // 8) * 8)
    if n_sub >= 4 * max_tb:
        tb = max_tb
    elif n_sub >= 32:
        tb = (n_sub // 4 // 8) * 8
    else:
        tb = _cdiv(n_sub, 8) * 8
    return max(8, min(max_tb, tb))


def sh_encode_soa(inputs, degree=4, size=1.0, block_sub=512):
    """SH features in lane-dense SoA layout: (degree**2, B) float32, transpose-free.

    Preferred (fast) interface: there is no output transpose pass -- only a free
    metadata reshape and a fusable slice.  Feed this straight into the downstream
    MLP matmul with the contraction on axis 0, e.g.
        lax.dot_general(feats, W, (((0,), (0,)), ((), ())))  ->  (B, hidden)
    instead of materializing the (B, degree**2) layout.
    """
    assert inputs.shape[-1] == 3, "SH encoder only supports input dim == 3"
    assert 1 <= degree <= 4, "this Pallas port supports degree in [1, 4]"
    output_dim = degree ** 2

    x = inputs.reshape(-1, 3).astype(jnp.float32)     # custom_fwd(cast_inputs=float32)
    b = x.shape[0]
    n_sub = _cdiv(b, 128)                             # number of 128-lane point groups
    tb_sub = _pick_tb_sub(n_sub, block_sub)
    n_sub_pad = _cdiv(n_sub, tb_sub) * tb_sub
    b_pad = n_sub_pad * 128

    # Input glue: transpose first, then pad only the (last) batch axis so XLA emits a
    # single fused pad+transpose pass; the reshape to (3, n_sub_pad, 128) is free.
    xt = x.T                                          # (3, b)
    if b_pad != b:
        xt = jnp.pad(xt, ((0, 0), (0, b_pad - b)))
    x_t = xt.reshape(3, n_sub_pad, 128)               # batch -> (sublane, lane), lane-dense

    # Double-buffered VMEM footprint; only raise the scoped-VMEM limit when a big
    # user-requested block would exceed v5e's 16 MiB default (v6e/v7x default is 32 MiB).
    block_bytes = (3 + output_dim) * tb_sub * 128 * 4
    compiler_kwargs = dict(dimension_semantics=("parallel",))
    if 2 * block_bytes > 12 * 1024 * 1024:
        compiler_kwargs["vmem_limit_bytes"] = min(2 * block_bytes + (4 << 20), 48 << 20)

    out_t = pl.pallas_call(
        functools.partial(_sh_kernel, degree=degree, inv_size=1.0 / float(size)),
        out_shape=jax.ShapeDtypeStruct((output_dim, n_sub_pad, 128), jnp.float32),
        grid=(n_sub_pad // tb_sub,),
        in_specs=[pl.BlockSpec((3, tb_sub, 128), lambda i: (0, i, 0))],
        out_specs=pl.BlockSpec((output_dim, tb_sub, 128), lambda i: (0, i, 0)),
        compiler_params=pltpu.CompilerParams(**compiler_kwargs),
    )(x_t)

    # Free reshape (row-major contiguous) + cheap/fusable slice; no transpose pass.
    return out_t.reshape(output_dim, b_pad)[:, :b]


def sh_encode(inputs, degree=4, size=1.0, block_sub=512):
    """Module-compatible forward: SHEncoder(3, degree).forward(inputs, size).

    Returns prefix_shape + (degree**2,).  The (B, degree**2) interface forces exactly
    one output transpose pass; perf-sensitive callers should consume sh_encode_soa()
    directly (or fuse the SH rows into the consumer matmul) to skip it.
    """
    prefix_shape = inputs.shape[:-1]
    feats = sh_encode_soa(inputs, degree=degree, size=size, block_sub=block_sub)
    out = feats.T                                     # (B, degree**2)
    return out.reshape(prefix_shape + (degree ** 2,))


class SHEncoder:
    """JAX mirror of lidarnerf.shencoder.SHEncoder (forward only)."""

    def __init__(self, input_dim=3, degree=4):
        assert input_dim == 3, "SH encoder only support input dim == 3"
        assert 0 < degree <= 4, "this Pallas port supports degree in [1, 4]"
        self.input_dim = input_dim
        self.degree = degree
        self.output_dim = degree ** 2

    def __call__(self, inputs, size=1):
        # TODO(synk): no custom_vjp / backward (dy_dx) port; forward pass only.
        return sh_encode(inputs, degree=self.degree, size=size)


def _sh_reference(inputs, degree=4, size=1.0):
    """Pure-JAX reference (same formulas) for correctness checking."""
    prefix_shape = inputs.shape[:-1]
    v = inputs.reshape(-1, 3).astype(jnp.float32) * (1.0 / float(size))
    x, y, z = v[:, 0], v[:, 1], v[:, 2]
    cols = [jnp.full_like(x, 0.28209479177387814)]
    if degree > 1:
        cols += [-0.48860251190291987 * y,
                 0.48860251190291987 * z,
                 -0.48860251190291987 * x]
    if degree > 2:
        xy, yz, xz = x * y, y * z, x * z
        x2, y2, z2 = x * x, y * y, z * z
        cols += [1.0925484305920792 * xy,
                 -1.0925484305920792 * yz,
                 0.94617469575755997 * z2 - 0.31539156525251999,
                 -1.0925484305920792 * xz,
                 0.54627421529603959 * x2 - 0.54627421529603959 * y2]
    if degree > 3:
        cols += [0.59004358992664352 * y * (-3.0 * x2 + y2),
                 2.8906114426405538 * xy * z,
                 0.45704579946446572 * y * (1.0 - 5.0 * z2),
                 0.3731763325901154 * z * (5.0 * z2 - 3.0),
                 0.45704579946446572 * x * (1.0 - 5.0 * z2),
                 1.4453057213202769 * z * (x2 - y2),
                 0.59004358992664352 * x * (-x2 + 3.0 * y2)]
    out = jnp.stack(cols, axis=-1)
    return out.reshape(prefix_shape + (degree ** 2,))


if __name__ == "__main__":
    key = jax.random.PRNGKey(0)

    # Small shape consistent with the module: directions with trailing dim 3.
    inputs = jax.random.normal(key, (2, 8, 3), dtype=jnp.float32)
    inputs = inputs / jnp.linalg.norm(inputs, axis=-1, keepdims=True)

    enc = SHEncoder(input_dim=3, degree=4)
    out = jax.block_until_ready(enc(inputs, size=1))
    ref = _sh_reference(inputs, degree=4, size=1.0)
    assert out.shape == (2, 8, 16), out.shape
    assert jnp.allclose(out, ref, atol=1e-5, rtol=1e-5)

    # SoA fast path (transpose-free) agrees with the AoS interface.
    soa = jax.block_until_ready(sh_encode_soa(inputs, degree=4, size=1.0))
    assert soa.shape == (16, 16), soa.shape
    assert jnp.allclose(soa.T.reshape(2, 8, 16), ref, atol=1e-5, rtol=1e-5)

    # Batch not a multiple of the lane width, size != 1, degree 2.
    inputs2 = jax.random.normal(jax.random.PRNGKey(1), (37, 3), dtype=jnp.float32)
    out2 = jax.block_until_ready(sh_encode(inputs2, degree=2, size=2.0))
    ref2 = _sh_reference(inputs2, degree=2, size=2.0)
    assert out2.shape == (37, 4), out2.shape
    assert jnp.allclose(out2, ref2, atol=1e-5, rtol=1e-5)

    # Multi-step grid path (small block_sub forces >1 grid step over the parallel axis).
    inputs3 = jax.random.normal(jax.random.PRNGKey(2), (1200, 3), dtype=jnp.float32)
    out3 = jax.block_until_ready(sh_encode(inputs3, degree=3, size=1.0, block_sub=8))
    ref3 = _sh_reference(inputs3, degree=3, size=1.0)
    assert out3.shape == (1200, 9), out3.shape
    assert jnp.allclose(out3, ref3, atol=1e-5, rtol=1e-5)

    print("KERNEL_OK")
</pallas_src>

<mosaic_0001>
module attributes {stable_mosaic.version = 11 : i64} {
  func.func @_sh_kernel(%arg0: i32, %arg1: memref<3x8x128xf32, #tpu.memory_space<vmem>>, %arg2: memref<16x8x128xf32, #tpu.memory_space<vmem>>) attributes {dimension_semantics = [#tpu.dimension_semantics<parallel>], iteration_bounds = array<i64: 1>, scalar_prefetch = 0 : i64, scratch_operands = 0 : i64, tpu.core_type = #tpu.core_type<tc>, window_params = [{transform_indices = @transform_0, window_bounds = array<i64: 3, 8, 128>}, {transform_indices = @transform_1, window_bounds = array<i64: 16, 8, 128>}]} {
    %c0 = arith.constant 0 : index
    %c0_0 = arith.constant 0 : index
    %c0_1 = arith.constant 0 : index
    %0 = vector.load %arg1[%c0, %c0_0, %c0_1] : memref<3x8x128xf32, #tpu.memory_space<vmem>>, vector<1x8x128xf32>
    %1 = vector.shape_cast %0 : vector<1x8x128xf32> to vector<8x128xf32>
    %cst = arith.constant 1.000000e+00 : f32
    %2 = vector.broadcast %cst : f32 to vector<8x128xf32>
    %3 = arith.mulf %1, %2 : vector<8x128xf32>
    %c1 = arith.constant 1 : index
    %c0_2 = arith.constant 0 : index
    %c0_3 = arith.constant 0 : index
    %4 = vector.load %arg1[%c1, %c0_2, %c0_3] : memref<3x8x128xf32, #tpu.memory_space<vmem>>, vector<1x8x128xf32>
    %5 = vector.shape_cast %4 : vector<1x8x128xf32> to vector<8x128xf32>
    %cst_4 = arith.constant 1.000000e+00 : f32
    %6 = vector.broadcast %cst_4 : f32 to vector<8x128xf32>
    %7 = arith.mulf %5, %6 : vector<8x128xf32>
    %c2 = arith.constant 2 : index
    %c0_5 = arith.constant 0 : index
    %c0_6 = arith.constant 0 : index
    %8 = vector.load %arg1[%c2, %c0_5, %c0_6] : memref<3x8x128xf32, #tpu.memory_space<vmem>>, vector<1x8x128xf32>
    %9 = vector.shape_cast %8 : vector<1x8x128xf32> to vector<8x128xf32>
    %cst_7 = arith.constant 1.000000e+00 : f32
    %10 = vector.broadcast %cst_7 : f32 to vector<8x128xf32>
    %11 = arith.mulf %9, %10 : vector<8x128xf32>
    %cst_8 = arith.constant 0.282094806 : f32
    %12 = vector.broadcast %cst_8 : f32 to vector<8x128xf32>
    %c0_9 = arith.constant 0 : index
    %c0_10 = arith.constant 0 : index
    %c0_11 = arith.constant 0 : index
    %13 = vector.load %arg2[%c0_9, %c0_10, %c0_11] : memref<16x8x128xf32, #tpu.memory_space<vmem>>, vector<1x8x128xf32>
    %14 = vector.shape_cast %13 : vector<1x8x128xf32> to vector<8x128xf32>
    %15 = vector.shape_cast %12 : vector<8x128xf32> to vector<1x8x128xf32>
    tpu.vector_store %arg2[%c0_9, %c0_10, %c0_11], %15 {strides = array<i32>} : memref<16x8x128xf32, #tpu.memory_space<vmem>>, vector<1x8x128xf32>,
    %cst_12 = arith.constant -0.488602519 : f32
    %16 = vector.broadcast %cst_12 : f32 to vector<8x128xf32>
    %17 = arith.mulf %16, %7 : vector<8x128xf32>
    %c1_13 = arith.constant 1 : index
    %c0_14 = arith.constant 0 : index
    %c0_15 = arith.constant 0 : index
    %18 = vector.load %arg2[%c1_13, %c0_14, %c0_15] : memref<16x8x128xf32, #tpu.memory_space<vmem>>, vector<1x8x128xf32>
    %19 = vector.shape_cast %18 : vector<1x8x128xf32> to vector<8x128xf32>
    %20 = vector.shape_cast %17 : vector<8x128xf32> to vector<1x8x128xf32>
    tpu.vector_store %arg2[%c1_13, %c0_14, %c0_15], %20 {strides = array<i32>} : memref<16x8x128xf32, #tpu.memory_space<vmem>>, vector<1x8x128xf32>,
    %cst_16 = arith.constant 0.488602519 : f32
    %21 = vector.broadcast %cst_16 : f32 to vector<8x128xf32>
    %22 = arith.mulf %21, %11 : vector<8x128xf32>
    %c2_17 = arith.constant 2 : index
    %c0_18 = arith.constant 0 : index
    %c0_19 = arith.constant 0 : index
    %23 = vector.load %arg2[%c2_17, %c0_18, %c0_19] : memref<16x8x128xf32, #tpu.memory_space<vmem>>, vector<1x8x128xf32>
    %24 = vector.shape_cast %23 : vector<1x8x128xf32> to vector<8x128xf32>
    %25 = vector.shape_cast %22 : vector<8x128xf32> to vector<1x8x128xf32>
    tpu.vector_store %arg2[%c2_17, %c0_18, %c0_19], %25 {strides = array<i32>} : memref<16x8x128xf32, #tpu.memory_space<vmem>>, vector<1x8x128xf32>,
    %cst_20 = arith.constant -0.488602519 : f32
    %26 = vector.broadcast %cst_20 : f32 to vector<8x128xf32>
    %27 = arith.mulf %26, %3 : vector<8x128xf32>
    %c3 = arith.constant 3 : index
    %c0_21 = arith.constant 0 : index
    %c0_22 = arith.constant 0 : index
    %28 = vector.load %arg2[%c3, %c0_21, %c0_22] : memref<16x8x128xf32, #tpu.memory_space<vmem>>, vector<1x8x128xf32>
    %29 = vector.shape_cast %28 : vector<1x8x128xf32> to vector<8x128xf32>
    %30 = vector.shape_cast %27 : vector<8x128xf32> to vector<1x8x128xf32>
    tpu.vector_store %arg2[%c3, %c0_21, %c0_22], %30 {strides = array<i32>} : memref<16x8x128xf32, #tpu.memory_space<vmem>>, vector<1x8x128xf32>,
    %31 = arith.mulf %3, %7 : vector<8x128xf32>
    %cst_23 = arith.constant 1.09254849 : f32
    %32 = vector.broadcast %cst_23 : f32 to vector<8x128xf32>
    %33 = arith.mulf %32, %31 : vector<8x128xf32>
    %c4 = arith.constant 4 : index
    %c0_24 = arith.constant 0 : index
    %c0_25 = arith.constant 0 : index
    %34 = vector.load %arg2[%c4, %c0_24, %c0_25] : memref<16x8x128xf32, #tpu.memory_space<vmem>>, vector<1x8x128xf32>
    %35 = vector.shape_cast %34 : vector<1x8x128xf32> to vector<8x128xf32>
    %36 = vector.shape_cast %33 : vector<8x128xf32> to vector<1x8x128xf32>
    tpu.vector_store %arg2[%c4, %c0_24, %c0_25], %36 {strides = array<i32>} : memref<16x8x128xf32, #tpu.memory_space<vmem>>, vector<1x8x128xf32>,
    %37 = arith.mulf %7, %11 : vector<8x128xf32>
    %cst_26 = arith.constant -1.09254849 : f32
    %38 = vector.broadcast %cst_26 : f32 to vector<8x128xf32>
    %39 = arith.mulf %38, %37 : vector<8x128xf32>
    %c5 = arith.constant 5 : index
    %c0_27 = arith.constant 0 : index
    %c0_28 = arith.constant 0 : index
    %40 = vector.load %arg2[%c5, %c0_27, %c0_28] : memref<16x8x128xf32, #tpu.memory_space<vmem>>, vector<1x8x128xf32>
    %41 = vector.shape_cast %40 : vector<1x8x128xf32> to vector<8x128xf32>
    %42 = vector.shape_cast %39 : vector<8x128xf32> to vector<1x8x128xf32>
    tpu.vector_store %arg2[%c5, %c0_27, %c0_28], %42 {strides = array<i32>} : memref<16x8x128xf32, #tpu.memory_space<vmem>>, vector<1x8x128xf32>,
    %43 = arith.mulf %3, %11 : vector<8x128xf32>
    %cst_29 = arith.constant -1.09254849 : f32
    %44 = vector.broadcast %cst_29 : f32 to vector<8x128xf32>
    %45 = arith.mulf %44, %43 : vector<8x128xf32>
    %c7 = arith.constant 7 : index
    %c0_30 = arith.constant 0 : index
    %c0_31 = arith.constant 0 : index
    %46 = vector.load %arg2[%c7, %c0_30, %c0_31] : memref<16x8x128xf32, #tpu.memory_space<vmem>>, vector<1x8x128xf32>
    %47 = vector.shape_cast %46 : vector<1x8x128xf32> to vector<8x128xf32>
    %48 = vector.shape_cast %45 : vector<8x128xf32> to vector<1x8x128xf32>
    tpu.vector_store %arg2[%c7, %c0_30, %c0_31], %48 {strides = array<i32>} : memref<16x8x128xf32, #tpu.memory_space<vmem>>, vector<1x8x128xf32>,
    %49 = arith.mulf %11, %11 : vector<8x128xf32>
    %cst_32 = arith.constant 0.946174681 : f32
    %50 = vector.broadcast %cst_32 : f32 to vector<8x128xf32>
    %51 = arith.mulf %50, %49 : vector<8x128xf32>
    %cst_33 = arith.constant 0.31539157 : f32
    %52 = vector.broadcast %cst_33 : f32 to vector<8x128xf32>
    %53 = arith.subf %51, %52 : vector<8x128xf32>
    %c6 = arith.constant 6 : index
    %c0_34 = arith.constant 0 : index
    %c0_35 = arith.constant 0 : index
    %54 = vector.load %arg2[%c6, %c0_34, %c0_35] : memref<16x8x128xf32, #tpu.memory_space<vmem>>, vector<1x8x128xf32>
    %55 = vector.shape_cast %54 : vector<1x8x128xf32> to vector<8x128xf32>
    %56 = vector.shape_cast %53 : vector<8x128xf32> to vector<1x8x128xf32>
    tpu.vector_store %arg2[%c6, %c0_34, %c0_35], %56 {strides = array<i32>} : memref<16x8x128xf32, #tpu.memory_space<vmem>>, vector<1x8x128xf32>,
    %57 = arith.mulf %3, %3 : vector<8x128xf32>
    %58 = arith.mulf %7, %7 : vector<8x128xf32>
    %59 = arith.subf %57, %58 : vector<8x128xf32>
    %cst_36 = arith.constant 0.546274245 : f32
    %60 = vector.broadcast %cst_36 : f32 to vector<8x128xf32>
    %61 = arith.mulf %60, %59 : vector<8x128xf32>
    %c8 = arith.constant 8 : index
    %c0_37 = arith.constant 0 : index
    %c0_38 = arith.constant 0 : index
    %62 = vector.load %arg2[%c8, %c0_37, %c0_38] : memref<16x8x128xf32, #tpu.memory_space<vmem>>, vector<1x8x128xf32>
    %63 = vector.shape_cast %62 : vector<1x8x128xf32> to vector<8x128xf32>
    %64 = vector.shape_cast %61 : vector<8x128xf32> to vector<1x8x128xf32>
    tpu.vector_store %arg2[%c8, %c0_37, %c0_38], %64 {strides = array<i32>} : memref<16x8x128xf32, #tpu.memory_space<vmem>>, vector<1x8x128xf32>,
    %cst_39 = arith.constant 2.89061141 : f32
    %65 = vector.broadcast %cst_39 : f32 to vector<8x128xf32>
    %66 = arith.mulf %65, %31 : vector<8x128xf32>
    %67 = arith.mulf %66, %11 : vector<8x128xf32>
    %c10 = arith.constant 10 : index
    %c0_40 = arith.constant 0 : index
    %c0_41 = arith.constant 0 : index
    %68 = vector.load %arg2[%c10, %c0_40, %c0_41] : memref<16x8x128xf32, #tpu.memory_space<vmem>>, vector<1x8x128xf32>
    %69 = vector.shape_cast %68 : vector<1x8x128xf32> to vector<8x128xf32>
    %70 = vector.shape_cast %67 : vector<8x128xf32> to vector<1x8x128xf32>
    tpu.vector_store %arg2[%c10, %c0_40, %c0_41], %70 {strides = array<i32>} : memref<16x8x128xf32, #tpu.memory_space<vmem>>, vector<1x8x128xf32>,
    %cst_42 = arith.constant 0.590043604 : f32
    %71 = vector.broadcast %cst_42 : f32 to vector<8x128xf32>
    %72 = arith.mulf %71, %7 : vector<8x128xf32>
    %cst_43 = arith.constant 3.000000e+00 : f32
    %73 = vector.broadcast %cst_43 : f32 to vector<8x128xf32>
    %74 = arith.mulf %73, %57 : vector<8x128xf32>
    %75 = arith.subf %58, %74 : vector<8x128xf32>
    %76 = arith.mulf %72, %75 : vector<8x128xf32>
    %c9 = arith.constant 9 : index
    %c0_44 = arith.constant 0 : index
    %c0_45 = arith.constant 0 : index
    %77 = vector.load %arg2[%c9, %c0_44, %c0_45] : memref<16x8x128xf32, #tpu.memory_space<vmem>>, vector<1x8x128xf32>
    %78 = vector.shape_cast %77 : vector<1x8x128xf32> to vector<8x128xf32>
    %79 = vector.shape_cast %76 : vector<8x128xf32> to vector<1x8x128xf32>
    tpu.vector_store %arg2[%c9, %c0_44, %c0_45], %79 {strides = array<i32>} : memref<16x8x128xf32, #tpu.memory_space<vmem>>, vector<1x8x128xf32>,
    %cst_46 = arith.constant 0.590043604 : f32
    %80 = vector.broadcast %cst_46 : f32 to vector<8x128xf32>
    %81 = arith.mulf %80, %3 : vector<8x128xf32>
    %cst_47 = arith.constant 3.000000e+00 : f32
    %82 = vector.broadcast %cst_47 : f32 to vector<8x128xf32>
    %83 = arith.mulf %82, %58 : vector<8x128xf32>
    %84 = arith.subf %83, %57 : vector<8x128xf32>
    %85 = arith.mulf %81, %84 : vector<8x128xf32>
    %c15 = arith.constant 15 : index
    %c0_48 = arith.constant 0 : index
    %c0_49 = arith.constant 0 : index
    %86 = vector.load %arg2[%c15, %c0_48, %c0_49] : memref<16x8x128xf32, #tpu.memory_space<vmem>>, vector<1x8x128xf32>
    %87 = vector.shape_cast %86 : vector<1x8x128xf32> to vector<8x128xf32>
    %88 = vector.shape_cast %85 : vector<8x128xf32> to vector<1x8x128xf32>
    tpu.vector_store %arg2[%c15, %c0_48, %c0_49], %88 {strides = array<i32>} : memref<16x8x128xf32, #tpu.memory_space<vmem>>, vector<1x8x128xf32>,
    %cst_50 = arith.constant 5.000000e+00 : f32
    %89 = vector.broadcast %cst_50 : f32 to vector<8x128xf32>
    %90 = arith.mulf %89, %49 : vector<8x128xf32>
    %cst_51 = arith.constant 1.000000e+00 : f32
    %91 = vector.broadcast %cst_51 : f32 to vector<8x128xf32>
    %92 = arith.subf %91, %90 : vector<8x128xf32>
    %cst_52 = arith.constant 0.457045794 : f32
    %93 = vector.broadcast %cst_52 : f32 to vector<8x128xf32>
    %94 = arith.mulf %93, %92 : vector<8x128xf32>
    %95 = arith.mulf %7, %94 : vector<8x128xf32>
    %c11 = arith.constant 11 : index
    %c0_53 = arith.constant 0 : index
    %c0_54 = arith.constant 0 : index
    %96 = vector.load %arg2[%c11, %c0_53, %c0_54] : memref<16x8x128xf32, #tpu.memory_space<vmem>>, vector<1x8x128xf32>
    %97 = vector.shape_cast %96 : vector<1x8x128xf32> to vector<8x128xf32>
    %98 = vector.shape_cast %95 : vector<8x128xf32> to vector<1x8x128xf32>
    tpu.vector_store %arg2[%c11, %c0_53, %c0_54], %98 {strides = array<i32>} : memref<16x8x128xf32, #tpu.memory_space<vmem>>, vector<1x8x128xf32>,
    %99 = arith.mulf %3, %94 : vector<8x128xf32>
    %c13 = arith.constant 13 : index
    %c0_55 = arith.constant 0 : index
    %c0_56 = arith.constant 0 : index
    %100 = vector.load %arg2[%c13, %c0_55, %c0_56] : memref<16x8x128xf32, #tpu.memory_space<vmem>>, vector<1x8x128xf32>
    %101 = vector.shape_cast %100 : vector<1x8x128xf32> to vector<8x128xf32>
    %102 = vector.shape_cast %99 : vector<8x128xf32> to vector<1x8x128xf32>
    tpu.vector_store %arg2[%c13, %c0_55, %c0_56], %102 {strides = array<i32>} : memref<16x8x128xf32, #tpu.memory_space<vmem>>, vector<1x8x128xf32>,
    %cst_57 = arith.constant 0.373176336 : f32
    %103 = vector.broadcast %cst_57 : f32 to vector<8x128xf32>
    %104 = arith.mulf %103, %11 : vector<8x128xf32>
    %cst_58 = arith.constant 5.000000e+00 : f32
    %105 = vector.broadcast %cst_58 : f32 to vector<8x128xf32>
    %106 = arith.mulf %105, %49 : vector<8x128xf32>
    %cst_59 = arith.constant 3.000000e+00 : f32
    %107 = vector.broadcast %cst_59 : f32 to vector<8x128xf32>
    %108 = arith.subf %106, %107 : vector<8x128xf32>
    %109 = arith.mulf %104, %108 : vector<8x128xf32>
    %c12 = arith.constant 12 : index
    %c0_60 = arith.constant 0 : index
    %c0_61 = arith.constant 0 : index
    %110 = vector.load %arg2[%c12, %c0_60, %c0_61] : memref<16x8x128xf32, #tpu.memory_space<vmem>>, vector<1x8x128xf32>
    %111 = vector.shape_cast %110 : vector<1x8x128xf32> to vector<8x128xf32>
    %112 = vector.shape_cast %109 : vector<8x128xf32> to vector<1x8x128xf32>
    tpu.vector_store %arg2[%c12, %c0_60, %c0_61], %112 {strides = array<i32>} : memref<16x8x128xf32, #tpu.memory_space<vmem>>, vector<1x8x128xf32>,
    %cst_62 = arith.constant 1.44530571 : f32
    %113 = vector.broadcast %cst_62 : f32 to vector<8x128xf32>
    %114 = arith.mulf %113, %11 : vector<8x128xf32>
    %115 = arith.mulf %114, %59 : vector<8x128xf32>
    %c14 = arith.constant 14 : index
    %c0_63 = arith.constant 0 : index
    %c0_64 = arith.constant 0 : index
    %116 = vector.load %arg2[%c14, %c0_63, %c0_64] : memref<16x8x128xf32, #tpu.memory_space<vmem>>, vector<1x8x128xf32>
    %117 = vector.shape_cast %116 : vector<1x8x128xf32> to vector<8x128xf32>
    %118 = vector.shape_cast %115 : vector<8x128xf32> to vector<1x8x128xf32>
    tpu.vector_store %arg2[%c14, %c0_63, %c0_64], %118 {strides = array<i32>} : memref<16x8x128xf32, #tpu.memory_space<vmem>>, vector<1x8x128xf32>,
    return
  }
  func.func @transform_0(%arg0: i32) -> (i32, i32, i32) {
    %c0_i32 = arith.constant 0 : i32
    %c0_i32_0 = arith.constant 0 : i32
    %c0_i32_1 = arith.constant 0 : i32
    return %c0_i32, %arg0, %c0_i32_0 : i32, i32, i32
  }
  func.func @transform_1(%arg0: i32) -> (i32, i32, i32) {
    %c0_i32 = arith.constant 0 : i32
    %c0_i32_0 = arith.constant 0 : i32
    %c0_i32_1 = arith.constant 0 : i32
    return %c0_i32, %arg0, %c0_i32_0 : i32, i32, i32
  }
}

</mosaic_0001>

<llo_original>
// kernel: tpu_custom_call.1
$region0: #{tpu_custom_call.1}
  #allocation0 [shape = 'u32[]', space=smem, size = 0x4, offset = 0x4, fixed_abs, tag = 'smem constant byte address 0x4 - core index']
  #allocation1 [shape = 'u32[144,128]{1,0:T(1,128)}', space=vmem, size = 0x12000, scoped, tag = 'internal scratch']
  %s0 = inlined_call_operand.hbm [shape: f32[3,8,128], index: 0, kind: input, shape index: {}]
  %s1 = inlined_call_operand.hbm [shape: f32[16,8,128], index: 1, kind: output, shape index: {}]
  %s2 = sld [smem:[#allocation0]]
  $region18: #{tpu_custom_call.1} parent=0
    _
  %s4 = ssub.s32 1, %s2
  %s5 = scalar_select 0, %s4, %s2
  $region1: #{tpu_custom_call.1} parent=0
    #allocation2 [shape = 'u8[12288]{0}', space=vmem, size = 0x3000, scoped, tag = 'input window, operand 0, single buffered']
    #allocation3 [shape = 's32[1]{0}', space=sflag, size = 0x4, scoped, tag = 'scoped memory for tpu_custom_call.1']
    #allocation4 [shape = 's32[1]{0}', space=sflag, size = 0x4, scoped, tag = 'scoped memory for tpu_custom_call.1']
    #allocation5 [shape = 'u8[65536]{0}', space=vmem, size = 0x10000, scoped, tag = 'output window, operand 0, single buffered']
    %6 = vsyncpa [#allocation3], 0
    %7 = vsyncpa [#allocation4], 0
    // Predicated region
    $region2: #{tpu_custom_call.1} parent=1 // pred_check
      _
    $region3: #{tpu_custom_call.1} parent=1 // pred_check_branch
      %9 = sbr.rel (0) target = $region5
    $region4: #{tpu_custom_call.1} parent=1 // pred_region
      %s11 = ssub.s32 384, 384
      %12 = vsyncadd [#allocation3], %s11
      %s13 = sshll.u32 [#allocation2], 4
      %s14 = int_to_ptr.vmem [resolvable:$true] %s13
      %19 = dma.hbm_to_vmem [thread:$0]  %s0, 384, %s14, [#allocation3], 128, 128, 8
    $region5: #{tpu_custom_call.1} parent=1 // pred_fallthru
      _
    // Predicated region
    $region6: #{tpu_custom_call.1} parent=1 // pred_check
      _
    $region7: #{tpu_custom_call.1} parent=1 // pred_check_branch
      %21 = sbr.rel (0) target = $region9
    $region8: #{tpu_custom_call.1} parent=1 // pred_region
      %22 = dma.done [#allocation3], 384
    $region9: #{tpu_custom_call.1} parent=1 // pred_fallthru
      _
    %v23 = vld [vmem:[#allocation2] sm:$0xff]
    %s24 = scalar_lea.vmem [#allocation2], 8
    %v25 = vld [vmem:[%s24] sm:$0xff]
    %s26 = scalar_lea.vmem [#allocation2], 16
    %v27 = vld [vmem:[%s26] sm:$0xff]
    %28 = vst [vmem:[#allocation5] sm:$0xff] 0.2820948
    %v29 = vmul.f32 %v25, -0.48860252
    %s30 = scalar_lea.vmem [#allocation5], 8
    %31 = vst [vmem:[%s30] sm:$0xff] %v29
    %v32 = vmul.f32 %v27, 0.48860252
    %s33 = scalar_lea.vmem [#allocation5], 16
    %34 = vst [vmem:[%s33] sm:$0xff] %v32
    %v35 = vmul.f32 %v23, -0.48860252
    %s36 = scalar_lea.vmem [#allocation5], 24
    %37 = vst [vmem:[%s36] sm:$0xff] %v35
    %v38 = vmul.f32 %v23, %v25
    %v39 = vmul.f32 %v38, 1.0925485
    %s40 = scalar_lea.vmem [#allocation5], 32
    %41 = vst [vmem:[%s40] sm:$0xff] %v39
    %v42 = vmul.f32 %v25, %v27
    %v43 = vmul.f32 %v42, -1.0925485
    %s44 = scalar_lea.vmem [#allocation5], 40
    %45 = vst [vmem:[%s44] sm:$0xff] %v43
    %v46 = vmul.f32 %v23, %v27
    %v47 = vmul.f32 %v46, -1.0925485
    %s48 = scalar_lea.vmem [#allocation5], 56
    %49 = vst [vmem:[%s48] sm:$0xff] %v47
    %v50 = vmul.f32 %v27, %v27
    %v51 = vmul.f32 %v50, 0.9461747
    %v52 = vsub.f32 %v51, 0.31539157
    %s53 = scalar_lea.vmem [#allocation5], 48
    %54 = vst [vmem:[%s53] sm:$0xff] %v52
    %v55 = vmul.f32 %v23, %v23
    %v56 = vmul.f32 %v25, %v25
    %v57 = vsub.f32 %v55, %v56
    %v58 = vmul.f32 %v57, 0.54627424
    %s59 = scalar_lea.vmem [#allocation5], 64
    %60 = vst [vmem:[%s59] sm:$0xff] %v58
    %v61 = vmul.f32 %v38, 2.8906114
    %v62 = vmul.f32 %v61, %v27
    %s63 = scalar_lea.vmem [#allocation5], 80
    %64 = vst [vmem:[%s63] sm:$0xff] %v62
    %v65 = vmul.f32 %v25, 0.5900436
    %v66 = vmul.f32 %v55, 3.0
    %v67 = vsub.f32 %v56, %v66
    %v68 = vmul.f32 %v65, %v67
    %s69 = scalar_lea.vmem [#allocation5], 72
    %70 = vst [vmem:[%s69] sm:$0xff] %v68
    %v71 = vmul.f32 %v23, 0.5900436
    %v72 = vmul.f32 %v56, 3.0
    %v73 = vsub.f32 %v72, %v55
    %v74 = vmul.f32 %v71, %v73
    %s75 = scalar_lea.vmem [#allocation5], 120
    %76 = vst [vmem:[%s75] sm:$0xff] %v74
    %v77 = vmul.f32 %v50, 5.0
    %v78 = vsub.f32 1.0, %v77
    %v79 = vmul.f32 %v78, 0.4570458
    %v80 = vmul.f32 %v25, %v79
    %s81 = scalar_lea.vmem [#allocation5], 88
    %82 = vst [vmem:[%s81] sm:$0xff] %v80
    %v83 = vmul.f32 %v23, %v79
    %s84 = scalar_lea.vmem [#allocation5], 104
    %85 = vst [vmem:[%s84] sm:$0xff] %v83
    %v86 = vmul.f32 %v27, 0.37317634
    %v87 = vsub.f32 %v77, 3.0
    %v88 = vmul.f32 %v86, %v87
    %s89 = scalar_lea.vmem [#allocation5], 96
    %90 = vst [vmem:[%s89] sm:$0xff] %v88
    %v91 = vmul.f32 %v27, 1.4453057
    %v92 = vmul.f32 %v91, %v57
    %s93 = scalar_lea.vmem [#allocation5], 112
    %94 = vst [vmem:[%s93] sm:$0xff] %v92
    // Predicated region
    $region10: #{tpu_custom_call.1} parent=1 // pred_check
      _
    $region11: #{tpu_custom_call.1} parent=1 // pred_check_branch
      %96 = sbr.rel (0) target = $region13
    $region12: #{tpu_custom_call.1} parent=1 // pred_region
      %s98 = ssub.s32 2048, 2048
      %99 = vsyncadd [#allocation4], %s98
      %s100 = sshll.u32 [#allocation5], 4
      %s101 = int_to_ptr.vmem [resolvable:$true] %s100
      %106 = dma.vmem_to_hbm [thread:$0]  %s101, 2048, %s1, [#allocation4], 128, 128, 8
    $region13: #{tpu_custom_call.1} parent=1 // pred_fallthru
      _
    // Predicated region
    $region14: #{tpu_custom_call.1} parent=1 // pred_check
      _
    $region15: #{tpu_custom_call.1} parent=1 // pred_check_branch
      %108 = sbr.rel (0) target = $region17
    $region16: #{tpu_custom_call.1} parent=1 // pred_region
      %109 = dma.done [#allocation4], 2048
    $region17: #{tpu_custom_call.1} parent=1 // pred_fallthru
      _
    %110 = vsyncpa [#allocation3], 1
    %111 = vsyncpa [#allocation4], 1

</llo_original>
